<compile_context>
chip_gen: v5e
topology: v5e:2x2
jax: 0.10.0
libtpu: 0.0.40
codegen_flags: <defaults>
</compile_context>

<pallas_src>
import jax
import jax.numpy as jnp
from jax.experimental import pallas as pl
from jax.experimental.pallas import tpu as pltpu

LOG_STD_MIN = -20.0
LOG_STD_MAX = 2.0
LANE = 128

# Max rows per grid step: 8192 rows x 128 lanes x 4 B = 4 MiB out block,
# x2 pipeline buffers = 8 MiB, safe under v7x's 32 MiB default scoped VMEM.
_MAX_BLOCK_ROWS = 8192


def _policy_kernel(state_ref, w1_ref, b1_ref, w2_ref, b2_ref, wh_ref, bh_ref,
                   lo_ref, hi_ref, out_ref):
    # in-kernel bf16 cast of the activations (state arrives as f32)
    x = state_ref[...].astype(w1_ref.dtype)                           # (Bt, I)

    # linear1 + relu  (bf16 MXU, f32 accumulation, f32 bias folded into acc)
    h1 = jnp.dot(x, w1_ref[...], preferred_element_type=jnp.float32) + b1_ref[...]
    h1 = jnp.maximum(h1, 0.0).astype(w2_ref.dtype)                    # (Bt, H)

    # linear2 + relu
    h2 = jnp.dot(h1, w2_ref[...], preferred_element_type=jnp.float32) + b2_ref[...]
    h2 = jnp.maximum(h2, 0.0).astype(wh_ref.dtype)                    # (Bt, H)

    # fused mean/log_std head: one matmul -> (Bt, NP) packed, lane-dense slab
    head = jnp.dot(h2, wh_ref[...], preferred_element_type=jnp.float32) + bh_ref[...]

    # per-lane clamp: lo/hi are +/-FLT_MAX on mean / padding lanes and
    # LOG_STD_MIN/MAX on the log_std lanes -> only log_std gets clipped.
    head = jnp.minimum(jnp.maximum(head, lo_ref[...]), hi_ref[...])

    out_ref[...] = head.astype(out_ref.dtype)                         # lane-dense store


def pack_params(params, compute_dtype=jnp.bfloat16):
    """One-time prep: fuse the two heads into one lane-dense weight, build the
    per-lane clamp bounds, and cast matmul weights to bf16.

    params = (w1, b1, w2, b2, wm, bm, ws, bs), weights already (in, out).
    Returns packed params + num_actions.
    """
    w1, b1, w2, b2, wm, bm, ws, bs = params
    H, A = wm.shape
    n_pad = max(LANE, ((2 * A + LANE - 1) // LANE) * LANE)

    wh = jnp.zeros((H, n_pad), jnp.float32)
    wh = wh.at[:, :A].set(wm).at[:, A:2 * A].set(ws)
    bh = jnp.zeros((1, n_pad), jnp.float32)
    bh = bh.at[:, :A].set(bm.reshape(1, A)).at[:, A:2 * A].set(bs.reshape(1, A))

    fmax = jnp.finfo(jnp.float32).max
    lo = jnp.full((1, n_pad), -fmax, jnp.float32).at[:, A:2 * A].set(LOG_STD_MIN)
    hi = jnp.full((1, n_pad), fmax, jnp.float32).at[:, A:2 * A].set(LOG_STD_MAX)

    packed = (w1.astype(compute_dtype), b1.astype(jnp.float32),
              w2.astype(compute_dtype), b2.astype(jnp.float32),
              wh.astype(compute_dtype), bh.astype(jnp.float32),
              lo, hi)
    return packed, int(A)


def _round_up(x, m):
    return ((x + m - 1) // m) * m


def policy_forward(state, packed, num_actions, out_dtype=jnp.bfloat16):
    """Pallas implementation of PolicyNetwork.forward -> (mean, log_std)."""
    w1, b1, w2, b2, wh, bh, lo, hi = packed
    B, I = state.shape
    H = w1.shape[1]
    NP = wh.shape[1]
    A = num_actions

    # Grid policy: one step for anything that fits the per-step VMEM budget
    # (v5e/v6e single TC -> serial grid steps are pure overhead); otherwise
    # split into VMEM-capped blocks that shard across v7x's two TensorCores.
    if B <= _MAX_BLOCK_ROWS:
        block_b = B
    else:
        block_b = min(_round_up(pl.cdiv(B, 2), 8), _MAX_BLOCK_ROWS)
    grid_b = pl.cdiv(B, block_b)
    b_pad = grid_b * block_b

    x = state
    if b_pad != B:
        x = jnp.pad(x, ((0, b_pad - B), (0, 0)))

    flops = 2 * b_pad * (I * H + H * H + H * NP)
    bytes_accessed = (x.size * x.dtype.itemsize
                      + sum(p.size * p.dtype.itemsize for p in packed)
                      + b_pad * NP * jnp.dtype(out_dtype).itemsize)

    out = pl.pallas_call(
        _policy_kernel,
        out_shape=jax.ShapeDtypeStruct((b_pad, NP), out_dtype),
        grid=(grid_b,),
        in_specs=[
            pl.BlockSpec((block_b, I), lambda i: (i, 0)),   # state tile (f32)
            pl.BlockSpec((I, H), lambda i: (0, 0)),         # w1 (bf16)
            pl.BlockSpec((1, H), lambda i: (0, 0)),         # b1 (f32)
            pl.BlockSpec((H, H), lambda i: (0, 0)),         # w2 (bf16)
            pl.BlockSpec((1, H), lambda i: (0, 0)),         # b2 (f32)
            pl.BlockSpec((H, NP), lambda i: (0, 0)),        # fused head weight (bf16)
            pl.BlockSpec((1, NP), lambda i: (0, 0)),        # fused head bias (f32)
            pl.BlockSpec((1, NP), lambda i: (0, 0)),        # per-lane clamp lo (f32)
            pl.BlockSpec((1, NP), lambda i: (0, 0)),        # per-lane clamp hi (f32)
        ],
        out_specs=pl.BlockSpec((block_b, NP), lambda i: (i, 0)),
        compiler_params=pltpu.CompilerParams(
            dimension_semantics=("parallel",)),
        cost_estimate=pl.CostEstimate(flops=flops,
                                      transcendentals=0,
                                      bytes_accessed=bytes_accessed),
    )(x, w1, b1, w2, b2, wh, bh, lo, hi)

    # TODO(synk): returning the packed slab (or fusing the SAC epilogue) would
    # avoid these two slice launches; kept for module-faithful (mean, log_std).
    mean = out[:B, :A]
    log_std = out[:B, A:2 * A]
    return mean, log_std


def init_params(key, num_inputs, num_actions, hidden_size, init_w=0.003):
    """Deterministic init mimicking the PyTorch module's __init__.

    linear1 / linear2: uniform(-1/sqrt(fan_in), 1/sqrt(fan_in)) (PyTorch default)
    mean / log_std heads: uniform(-init_w, init_w)
    Weights returned already transposed to (in, out) for x @ W.
    """
    ks = jax.random.split(key, 8)

    def unif(k, shape, bound):
        return jax.random.uniform(k, shape, jnp.float32, -bound, bound)

    bnd1 = 1.0 / jnp.sqrt(num_inputs)
    bnd2 = 1.0 / jnp.sqrt(hidden_size)

    w1 = unif(ks[0], (num_inputs, hidden_size), bnd1)
    b1 = unif(ks[1], (1, hidden_size), bnd1)
    w2 = unif(ks[2], (hidden_size, hidden_size), bnd2)
    b2 = unif(ks[3], (1, hidden_size), bnd2)
    wm = unif(ks[4], (hidden_size, num_actions), init_w)
    bm = unif(ks[5], (1, num_actions), init_w)
    ws = unif(ks[6], (hidden_size, num_actions), init_w)
    bs = unif(ks[7], (1, num_actions), init_w)
    return (w1, b1, w2, b2, wm, bm, ws, bs)


def reference_forward(state, params):
    """Pure-JAX f32 reference of PolicyNetwork.forward."""
    w1, b1, w2, b2, wm, bm, ws, bs = params
    h1 = jnp.maximum(state @ w1 + b1, 0.0)
    h2 = jnp.maximum(h1 @ w2 + b2, 0.0)
    mean = h2 @ wm + bm
    log_std = jnp.clip(h2 @ ws + bs, LOG_STD_MIN, LOG_STD_MAX)
    return mean, log_std


if __name__ == "__main__":
    num_inputs, num_actions, hidden_size = 32, 4, 32
    batch = 8

    key = jax.random.PRNGKey(0)
    k_param, k_state = jax.random.split(key)

    params = init_params(k_param, num_inputs, num_actions, hidden_size)
    state = jax.random.normal(k_state, (batch, num_inputs), jnp.float32)

    packed, A = pack_params(params)

    fwd = jax.jit(policy_forward, static_argnums=(2,))
    mean, log_std = fwd(state, packed, A)
    jax.block_until_ready((mean, log_std))

    # sanity check against pure-JAX f32 reference (bf16 matmul/output -> looser tol)
    ref_mean, ref_log_std = reference_forward(state, params)
    assert mean.shape == (batch, num_actions)
    assert log_std.shape == (batch, num_actions)
    assert jnp.allclose(mean.astype(jnp.float32), ref_mean, atol=1e-2), "mean mismatch"
    assert jnp.allclose(log_std.astype(jnp.float32), ref_log_std, atol=1e-2), "log_std mismatch"
    assert bool(jnp.all(log_std >= LOG_STD_MIN)) and bool(jnp.all(log_std <= LOG_STD_MAX))

    print("KERNEL_OK")
</pallas_src>

<mosaic_0001>
module attributes {stable_mosaic.version = 11 : i64} {
  func.func @_policy_kernel(%arg0: i32, %arg1: memref<8x32xf32, #tpu.memory_space<vmem>>, %arg2: memref<32x32xbf16, #tpu.memory_space<vmem>>, %arg3: memref<1x32xf32, #tpu.memory_space<vmem>>, %arg4: memref<32x32xbf16, #tpu.memory_space<vmem>>, %arg5: memref<1x32xf32, #tpu.memory_space<vmem>>, %arg6: memref<32x128xbf16, #tpu.memory_space<vmem>>, %arg7: memref<1x128xf32, #tpu.memory_space<vmem>>, %arg8: memref<1x128xf32, #tpu.memory_space<vmem>>, %arg9: memref<1x128xf32, #tpu.memory_space<vmem>>, %arg10: memref<8x128xbf16, #tpu.memory_space<vmem>>) attributes {dimension_semantics = [#tpu.dimension_semantics<parallel>], iteration_bounds = array<i64: 1>, scalar_prefetch = 0 : i64, scratch_operands = 0 : i64, tpu.core_type = #tpu.core_type<tc>, window_params = [{transform_indices = @transform_0, window_bounds = array<i64: 8, 32>}, {pipeline_mode = #tpu.pipeline_mode<synchronous>, transform_indices = @transform_1, window_bounds = array<i64: 32, 32>}, {pipeline_mode = #tpu.pipeline_mode<synchronous>, transform_indices = @transform_2, window_bounds = array<i64: 1, 32>}, {pipeline_mode = #tpu.pipeline_mode<synchronous>, transform_indices = @transform_3, window_bounds = array<i64: 32, 32>}, {pipeline_mode = #tpu.pipeline_mode<synchronous>, transform_indices = @transform_4, window_bounds = array<i64: 1, 32>}, {pipeline_mode = #tpu.pipeline_mode<synchronous>, transform_indices = @transform_5, window_bounds = array<i64: 32, 128>}, {pipeline_mode = #tpu.pipeline_mode<synchronous>, transform_indices = @transform_6, window_bounds = array<i64: 1, 128>}, {pipeline_mode = #tpu.pipeline_mode<synchronous>, transform_indices = @transform_7, window_bounds = array<i64: 1, 128>}, {pipeline_mode = #tpu.pipeline_mode<synchronous>, transform_indices = @transform_8, window_bounds = array<i64: 1, 128>}, {transform_indices = @transform_9, window_bounds = array<i64: 8, 128>}]} {
    %c0 = arith.constant 0 : index
    %c0_0 = arith.constant 0 : index
    %0 = vector.load %arg1[%c0, %c0_0] : memref<8x32xf32, #tpu.memory_space<vmem>>, vector<8x32xf32>
    %1 = arith.truncf %0 : vector<8x32xf32> to vector<8x32xbf16>
    %c0_1 = arith.constant 0 : index
    %c0_2 = arith.constant 0 : index
    %2 = vector.load %arg2[%c0_1, %c0_2] : memref<32x32xbf16, #tpu.memory_space<vmem>>, vector<32x32xbf16>
    %cst = arith.constant dense<0.000000e+00> : vector<8x32xf32>
    %3 = tpu.matmul %1, %2, %cst {dimension_numbers = #tpu.dot_dimension_numbers<[1], [0], [0], [1], [0, 0, 1, 1], [], []>} : vector<8x32xbf16>, vector<32x32xbf16>, vector<8x32xf32> -> vector<8x32xf32>
    %c0_3 = arith.constant 0 : index
    %c0_4 = arith.constant 0 : index
    %4 = vector.load %arg3[%c0_3, %c0_4] : memref<1x32xf32, #tpu.memory_space<vmem>>, vector<1x32xf32>
    %5 = vector.broadcast %4 : vector<1x32xf32> to vector<8x32xf32>
    %6 = arith.addf %3, %5 : vector<8x32xf32>
    %cst_5 = arith.constant 0.000000e+00 : f32
    %7 = vector.broadcast %cst_5 : f32 to vector<8x32xf32>
    %8 = arith.maximumf %6, %7 : vector<8x32xf32>
    %9 = arith.truncf %8 : vector<8x32xf32> to vector<8x32xbf16>
    %c0_6 = arith.constant 0 : index
    %c0_7 = arith.constant 0 : index
    %10 = vector.load %arg4[%c0_6, %c0_7] : memref<32x32xbf16, #tpu.memory_space<vmem>>, vector<32x32xbf16>
    %cst_8 = arith.constant dense<0.000000e+00> : vector<8x32xf32>
    %11 = tpu.matmul %9, %10, %cst_8 {dimension_numbers = #tpu.dot_dimension_numbers<[1], [0], [0], [1], [0, 0, 1, 1], [], []>} : vector<8x32xbf16>, vector<32x32xbf16>, vector<8x32xf32> -> vector<8x32xf32>
    %c0_9 = arith.constant 0 : index
    %c0_10 = arith.constant 0 : index
    %12 = vector.load %arg5[%c0_9, %c0_10] : memref<1x32xf32, #tpu.memory_space<vmem>>, vector<1x32xf32>
    %13 = vector.broadcast %12 : vector<1x32xf32> to vector<8x32xf32>
    %14 = arith.addf %11, %13 : vector<8x32xf32>
    %cst_11 = arith.constant 0.000000e+00 : f32
    %15 = vector.broadcast %cst_11 : f32 to vector<8x32xf32>
    %16 = arith.maximumf %14, %15 : vector<8x32xf32>
    %17 = arith.truncf %16 : vector<8x32xf32> to vector<8x32xbf16>
    %c0_12 = arith.constant 0 : index
    %c0_13 = arith.constant 0 : index
    %18 = vector.load %arg6[%c0_12, %c0_13] : memref<32x128xbf16, #tpu.memory_space<vmem>>, vector<32x128xbf16>
    %cst_14 = arith.constant dense<0.000000e+00> : vector<8x128xf32>
    %19 = tpu.matmul %17, %18, %cst_14 {dimension_numbers = #tpu.dot_dimension_numbers<[1], [0], [0], [1], [0, 0, 1, 1], [], []>} : vector<8x32xbf16>, vector<32x128xbf16>, vector<8x128xf32> -> vector<8x128xf32>
    %c0_15 = arith.constant 0 : index
    %c0_16 = arith.constant 0 : index
    %20 = vector.load %arg7[%c0_15, %c0_16] : memref<1x128xf32, #tpu.memory_space<vmem>>, vector<1x128xf32>
    %21 = vector.broadcast %20 : vector<1x128xf32> to vector<8x128xf32>
    %22 = arith.addf %19, %21 : vector<8x128xf32>
    %c0_17 = arith.constant 0 : index
    %c0_18 = arith.constant 0 : index
    %23 = vector.load %arg8[%c0_17, %c0_18] : memref<1x128xf32, #tpu.memory_space<vmem>>, vector<1x128xf32>
    %24 = vector.broadcast %23 : vector<1x128xf32> to vector<8x128xf32>
    %25 = arith.maximumf %22, %24 : vector<8x128xf32>
    %c0_19 = arith.constant 0 : index
    %c0_20 = arith.constant 0 : index
    %26 = vector.load %arg9[%c0_19, %c0_20] : memref<1x128xf32, #tpu.memory_space<vmem>>, vector<1x128xf32>
    %27 = vector.broadcast %26 : vector<1x128xf32> to vector<8x128xf32>
    %28 = arith.minimumf %25, %27 : vector<8x128xf32>
    %29 = arith.truncf %28 : vector<8x128xf32> to vector<8x128xbf16>
    %c0_21 = arith.constant 0 : index
    %c0_22 = arith.constant 0 : index
    %30 = vector.load %arg10[%c0_21, %c0_22] : memref<8x128xbf16, #tpu.memory_space<vmem>>, vector<8x128xbf16>
    tpu.vector_store %arg10[%c0_21, %c0_22], %29 {strides = array<i32>} : memref<8x128xbf16, #tpu.memory_space<vmem>>, vector<8x128xbf16>,
    return
  }
  func.func @transform_0(%arg0: i32) -> (i32, i32) {
    %c0_i32 = arith.constant 0 : i32
    %c0_i32_0 = arith.constant 0 : i32
    return %arg0, %c0_i32 : i32, i32
  }
  func.func @transform_1(%arg0: i32) -> (i32, i32) {
    %c0_i32 = arith.constant 0 : i32
    %c0_i32_0 = arith.constant 0 : i32
    %c0_i32_1 = arith.constant 0 : i32
    return %c0_i32, %c0_i32_0 : i32, i32
  }
  func.func @transform_2(%arg0: i32) -> (i32, i32) {
    %c0_i32 = arith.constant 0 : i32
    %c0_i32_0 = arith.constant 0 : i32
    %c0_i32_1 = arith.constant 0 : i32
    return %c0_i32, %c0_i32_0 : i32, i32
  }
  func.func @transform_3(%arg0: i32) -> (i32, i32) {
    %c0_i32 = arith.constant 0 : i32
    %c0_i32_0 = arith.constant 0 : i32
    %c0_i32_1 = arith.constant 0 : i32
    return %c0_i32, %c0_i32_0 : i32, i32
  }
  func.func @transform_4(%arg0: i32) -> (i32, i32) {
    %c0_i32 = arith.constant 0 : i32
    %c0_i32_0 = arith.constant 0 : i32
    %c0_i32_1 = arith.constant 0 : i32
    return %c0_i32, %c0_i32_0 : i32, i32
  }
  func.func @transform_5(%arg0: i32) -> (i32, i32) {
    %c0_i32 = arith.constant 0 : i32
    %c0_i32_0 = arith.constant 0 : i32
    %c0_i32_1 = arith.constant 0 : i32
    return %c0_i32, %c0_i32_0 : i32, i32
  }
  func.func @transform_6(%arg0: i32) -> (i32, i32) {
    %c0_i32 = arith.constant 0 : i32
    %c0_i32_0 = arith.constant 0 : i32
    %c0_i32_1 = arith.constant 0 : i32
    return %c0_i32, %c0_i32_0 : i32, i32
  }
  func.func @transform_7(%arg0: i32) -> (i32, i32) {
    %c0_i32 = arith.constant 0 : i32
    %c0_i32_0 = arith.constant 0 : i32
    %c0_i32_1 = arith.constant 0 : i32
    return %c0_i32, %c0_i32_0 : i32, i32
  }
  func.func @transform_8(%arg0: i32) -> (i32, i32) {
    %c0_i32 = arith.constant 0 : i32
    %c0_i32_0 = arith.constant 0 : i32
    %c0_i32_1 = arith.constant 0 : i32
    return %c0_i32, %c0_i32_0 : i32, i32
  }
  func.func @transform_9(%arg0: i32) -> (i32, i32) {
    %c0_i32 = arith.constant 0 : i32
    %c0_i32_0 = arith.constant 0 : i32
    return %arg0, %c0_i32 : i32, i32
  }
}

</mosaic_0001>

<llo_original>
// kernel: policy_forward.1
$region0: #{policy_forward.1}
  #allocation0 [shape = 'u32[]', space=smem, size = 0x4, offset = 0x4, fixed_abs, tag = 'smem constant byte address 0x4 - core index']
  #allocation1 [shape = 'u32[72,128]{1,0:T(1,128)}', space=vmem, size = 0x9000, scoped, tag = 'internal scratch']
  %s0 = inlined_call_operand.hbm [shape: f32[8,32], index: 0, kind: input, shape index: {}]
  %s1 = inlined_call_operand.hbm [shape: bf16[32,32], index: 1, kind: input, shape index: {}]
  %s2 = inlined_call_operand.vmem [shape: f32[1,32], index: 2, kind: input, shape index: {}]
  %s3 = inlined_call_operand.hbm [shape: bf16[32,32], index: 3, kind: input, shape index: {}]
  %s4 = inlined_call_operand.vmem [shape: f32[1,32], index: 4, kind: input, shape index: {}]
  %s5 = inlined_call_operand.hbm [shape: bf16[32,128], index: 5, kind: input, shape index: {}]
  %s6 = inlined_call_operand.vmem [shape: f32[1,128], index: 6, kind: input, shape index: {}]
  %s7 = inlined_call_operand.vmem [shape: f32[1,128], index: 7, kind: input, shape index: {}]
  %s8 = inlined_call_operand.vmem [shape: f32[1,128], index: 8, kind: input, shape index: {}]
  %s9 = inlined_call_operand.vmem [shape: bf16[8,128], index: 9, kind: output, shape index: {}]
  %s10 = sld [smem:[#allocation0]]
  $region62: #{policy_forward.1} parent=0
    _
  %s12 = ssub.s32 1, %s10
  %s13 = scalar_select 0, %s12, %s10
  $region1: #{policy_forward.1} parent=0
    #allocation2 [shape = 'u8[4096]{0}', space=vmem, size = 0x1000, scoped, tag = 'input window, operand 0, single buffered']
    #allocation3 [shape = 's32[1]{0}', space=sflag, size = 0x4, scoped, tag = 'scoped memory for policy_forward.1']
    #allocation4 [shape = 'u8[8192]{0}', space=vmem, size = 0x2000, scoped, tag = 'input window, operand 1, single buffered']
    #allocation5 [shape = 's32[1]{0}', space=sflag, size = 0x4, scoped, tag = 'scoped memory for policy_forward.1']
    #allocation6 [shape = 'u8[8192]{0}', space=vmem, size = 0x2000, scoped, tag = 'input window, operand 3, single buffered']
    #allocation7 [shape = 'u8[8192]{0}', space=vmem, size = 0x2000, scoped, tag = 'input window, operand 5, single buffered']
    #allocation8 [shape = 's32[1]{0}', space=sflag, size = 0x4, scoped, tag = 'scoped memory for policy_forward.1']
    %14 = vsyncpa [#allocation3], 0
    %15 = vsyncpa [#allocation5], 0
    %16 = vsyncpa [#allocation8], 0
    // Predicated region
    $region2: #{policy_forward.1} parent=1 // pred_check
      _
    $region3: #{policy_forward.1} parent=1 // pred_check_branch
      %18 = sbr.rel (0) target = $region5
    $region4: #{policy_forward.1} parent=1 // pred_region
      %20 = vsyncadd [#allocation3], 0
      %s22 = sshll.u32 %s0, 4
      %s23 = int_to_ptr.hbm [resolvable:$true] %s22
      %s24 = sshll.u32 [#allocation2], 4
      %s25 = int_to_ptr.vmem [resolvable:$true] %s24
      %27 = dma.hbm_to_vmem [thread:$0]  %s23, 128, %s25, [#allocation3]
    $region5: #{policy_forward.1} parent=1 // pred_fallthru
      _
    // Predicated region
    $region6: #{policy_forward.1} parent=1 // pred_check
      _
    $region7: #{policy_forward.1} parent=1 // pred_check_branch
      %29 = sbr.rel (0) target = $region9
    $region8: #{policy_forward.1} parent=1 // pred_region
      %31 = vsyncadd [#allocation5], 0
      %s32 = sshll.u32 %s1, 4
      %s33 = int_to_ptr.hbm [resolvable:$true] %s32
      %s34 = sshll.u32 [#allocation4], 4
      %s35 = int_to_ptr.vmem [resolvable:$true] %s34
      %40 = dma.hbm_to_vmem [thread:$0]  %s33, 256, %s35, [#allocation5], 64, 64, 4
    $region9: #{policy_forward.1} parent=1 // pred_fallthru
      _
    // Predicated region
    $region10: #{policy_forward.1} parent=1 // pred_check
      _
    $region11: #{policy_forward.1} parent=1 // pred_check_branch
      %42 = sbr.rel (0) target = $region13
    $region12: #{policy_forward.1} parent=1 // pred_region
      _
    $region13: #{policy_forward.1} parent=1 // pred_fallthru
      _
    // Predicated region
    $region14: #{policy_forward.1} parent=1 // pred_check
      _
    $region15: #{policy_forward.1} parent=1 // pred_check_branch
      %44 = sbr.rel (0) target = $region17
    $region16: #{policy_forward.1} parent=1 // pred_region
      %46 = vsyncadd [#allocation5], 0
      %s47 = sshll.u32 %s3, 4
      %s48 = int_to_ptr.hbm [resolvable:$true] %s47
      %s49 = sshll.u32 [#allocation6], 4
      %s50 = int_to_ptr.vmem [resolvable:$true] %s49
      %55 = dma.hbm_to_vmem [thread:$0]  %s48, 256, %s50, [#allocation5], 64, 64, 4
    $region17: #{policy_forward.1} parent=1 // pred_fallthru
      _
    // Predicated region
    $region18: #{policy_forward.1} parent=1 // pred_check
      _
    $region19: #{policy_forward.1} parent=1 // pred_check_branch
      %57 = sbr.rel (0) target = $region21
    $region20: #{policy_forward.1} parent=1 // pred_region
      _
    $region21: #{policy_forward.1} parent=1 // pred_fallthru
      _
    // Predicated region
    $region22: #{policy_forward.1} parent=1 // pred_check
      _
    $region23: #{policy_forward.1} parent=1 // pred_check_branch
      %59 = sbr.rel (0) target = $region25
    $region24: #{policy_forward.1} parent=1 // pred_region
      %61 = vsyncadd [#allocation8], 0
      %s62 = sshll.u32 %s5, 4
      %s63 = int_to_ptr.hbm [resolvable:$true] %s62
      %s64 = sshll.u32 [#allocation7], 4
      %s65 = int_to_ptr.vmem [resolvable:$true] %s64
      %70 = dma.hbm_to_vmem [thread:$0]  %s63, 256, %s65, [#allocation8], 64, 64, 4
    $region25: #{policy_forward.1} parent=1 // pred_fallthru
      _
    // Predicated region
    $region26: #{policy_forward.1} parent=1 // pred_check
      _
    $region27: #{policy_forward.1} parent=1 // pred_check_branch
      %72 = sbr.rel (0) target = $region29
    $region28: #{policy_forward.1} parent=1 // pred_region
      _
    $region29: #{policy_forward.1} parent=1 // pred_fallthru
      _
    // Predicated region
    $region30: #{policy_forward.1} parent=1 // pred_check
      _
    $region31: #{policy_forward.1} parent=1 // pred_check_branch
      %74 = sbr.rel (0) target = $region33
    $region32: #{policy_forward.1} parent=1 // pred_region
      _
    $region33: #{policy_forward.1} parent=1 // pred_fallthru
      _
    // Predicated region
    $region34: #{policy_forward.1} parent=1 // pred_check
      _
    $region35: #{policy_forward.1} parent=1 // pred_check_branch
      %76 = sbr.rel (0) target = $region37
    $region36: #{policy_forward.1} parent=1 // pred_region
      _
    $region37: #{policy_forward.1} parent=1 // pred_fallthru
      _
    // Predicated region
    $region38: #{policy_forward.1} parent=1 // pred_check
      _
    $region39: #{policy_forward.1} parent=1 // pred_check_branch
      %78 = sbr.rel (0) target = $region41
    $region40: #{policy_forward.1} parent=1 // pred_region
      %80 = dma.done [#allocation3], 128
    $region41: #{policy_forward.1} parent=1 // pred_fallthru
      _
    // Predicated region
    $region42: #{policy_forward.1} parent=1 // pred_check
      _
    $region43: #{policy_forward.1} parent=1 // pred_check_branch
      %82 = sbr.rel (0) target = $region45
    $region44: #{policy_forward.1} parent=1 // pred_region
      %84 = dma.done [#allocation5], 256
    $region45: #{policy_forward.1} parent=1 // pred_fallthru
      _
    // Predicated region
    $region46: #{policy_forward.1} parent=1 // pred_check
      _
    $region47: #{policy_forward.1} parent=1 // pred_check_branch
      %86 = sbr.rel (0) target = $region49
    $region48: #{policy_forward.1} parent=1 // pred_region
      %88 = dma.done [#allocation5], 256
    $region49: #{policy_forward.1} parent=1 // pred_fallthru
      _
    // Predicated region
    $region50: #{policy_forward.1} parent=1 // pred_check
      _
    $region51: #{policy_forward.1} parent=1 // pred_check_branch
      %90 = sbr.rel (0) target = $region53
    $region52: #{policy_forward.1} parent=1 // pred_region
      %92 = dma.done [#allocation8], 256
    $region53: #{policy_forward.1} parent=1 // pred_fallthru
      _
    %v94 = vld [vmem:[#allocation2] sm:$0xff]
    %v95 = vpack.c.bf16 %v94, %v94
    %v96 = vld [vmem:[#allocation4] sm:$0xf]
    %v97 = vld [vmem:[#allocation4 + $0x4] sm:$0xf]
    %v98 = vld [vmem:[#allocation4 + $0x8] sm:$0xf]
    %v99 = vld [vmem:[#allocation4 + $0xc] sm:$0xf]
    %v100 = vld [vmem:[%s2] sm:$0x1]
    %v102 = vperm.slane %v100, 0
    %v108 = vunpack.c.l.b16 %v96
    %v109 = vunpack.c.l.b16 %v97
    %v110 = vunpack.c.l.b16 %v98
    %v111 = vunpack.c.l.b16 %v99
    %v112 = vpack.c.b16 %v109, %v108
    %v113 = vpack.c.b16 %v111, %v110
    %vm116 = vcmask 261120
    %v118 = vsel %vm116, %v95, 0
    %120 = vmatpush.bf16.msra.mxu0 0
    %121 = vmatpush.bf16.msra.mxu0 0
    %122 = vmatpush.bf16.msra.mxu0 0
    %123 = vmatpush.bf16.msra.mxu0 0
    %124 = vmatpush.bf16.msra.mxu0 0
    %125 = vmatpush.bf16.msra.mxu0 0
    %126 = vmatpush.bf16.msra.mxu0 %v113
    %127 = vmatpush.bf16.msra.mxu0 %v112
    %128 = vmatmul.bf16.gmra.mxu0 %v118
    %v129 = vpop.f32.mrf.mxu0
    %v130 = vadd.f32 %v102, %v129
    %v131 = vpop.f32.mrf.mxu0
    %132 = vdwg.mxu0
    %v133 = vmax.f32 %v130, 0.0
    %v134 = vpack.c.bf16 %v133, %v133
    %v135 = vld [vmem:[#allocation6] sm:$0xf]
    %v136 = vld [vmem:[#allocation6 + $0x4] sm:$0xf]
    %v137 = vld [vmem:[#allocation6 + $0x8] sm:$0xf]
    %v138 = vld [vmem:[#allocation6 + $0xc] sm:$0xf]
    %v139 = vld [vmem:[%s4] sm:$0x1]
    %v141 = vperm.slane %v139, 0
    %v147 = vunpack.c.l.b16 %v135
    %v148 = vunpack.c.l.b16 %v136
    %v149 = vunpack.c.l.b16 %v137
    %v150 = vunpack.c.l.b16 %v138
    %v151 = vpack.c.b16 %v148, %v147
    %v152 = vpack.c.b16 %v150, %v149
    %v156 = vsel %vm116, %v134, 0
    %158 = vmatpush.bf16.msra.mxu0 0
    %159 = vmatpush.bf16.msra.mxu0 0
    %160 = vmatpush.bf16.msra.mxu0 0
    %161 = vmatpush.bf16.msra.mxu0 0
    %162 = vmatpush.bf16.msra.mxu0 0
    %163 = vmatpush.bf16.msra.mxu0 0
    %164 = vmatpush.bf16.msra.mxu0 %v152
    %165 = vmatpush.bf16.msra.mxu0 %v151
    %166 = vmatmul.bf16.gmra.mxu0 %v156
    %v167 = vpop.f32.mrf.mxu0
    %v168 = vadd.f32 %v141, %v167
    %v169 = vpop.f32.mrf.mxu0
    %170 = vdwg.mxu0
    %v171 = vmax.f32 %v168, 0.0
    %v172 = vpack.c.bf16 %v171, %v171
    %v173 = vld [vmem:[#allocation7] sm:$0xf]
    %v174 = vld [vmem:[#allocation7 + $0x4] sm:$0xf]
    %v175 = vld [vmem:[#allocation7 + $0x8] sm:$0xf]
    %v176 = vld [vmem:[#allocation7 + $0xc] sm:$0xf]
    %v177 = vld [vmem:[%s6] sm:$0x1]
    %v179 = vperm.slane %v177, 0
    %v185 = vunpack.c.l.b16 %v173
    %v186 = vunpack.c.l.b16 %v174
    %v187 = vunpack.c.l.b16 %v175
    %v188 = vunpack.c.l.b16 %v176
    %v189 = vpack.c.b16 %v186, %v185
    %v190 = vpack.c.b16 %v188, %v187
    %v194 = vsel %vm116, %v172, 0
    %196 = vmatpush.bf16.msra.mxu0 0
    %197 = vmatpush.bf16.msra.mxu0 0
    %198 = vmatpush.bf16.msra.mxu0 0
    %199 = vmatpush.bf16.msra.mxu0 0
    %200 = vmatpush.bf16.msra.mxu0 0
    %201 = vmatpush.bf16.msra.mxu0 0
    %202 = vmatpush.bf16.msra.mxu0 %v190
    %203 = vmatpush.bf16.msra.mxu0 %v189
    %204 = vmatmul.bf16.gmra.mxu0 %v194
    %v205 = vpop.f32.mrf.mxu0
    %v206 = vadd.f32 %v179, %v205
    %v207 = vpop.f32.mrf.mxu0
    %208 = vdwg.mxu0
    %v209 = vld [vmem:[%s7] sm:$0x1]
    %v211 = vperm.slane %v209, 0
    %v213 = vmax.f32 %v206, %v211
    %v214 = vld [vmem:[%s8] sm:$0x1]
    %v216 = vperm.slane %v214, 0
    %v218 = vmin.f32 %v213, %v216
    %v219 = vpack.c.bf16 %v218, %v218
    %220 = vst [vmem:[%s9] sm:$0xf] %v219
    // Predicated region
    $region54: #{policy_forward.1} parent=1 // pred_check
      _
    $region55: #{policy_forward.1} parent=1 // pred_check_branch
      %222 = sbr.rel (0) target = $region57
    $region56: #{policy_forward.1} parent=1 // pred_region
      _
    $region57: #{policy_forward.1} parent=1 // pred_fallthru
      _
    // Predicated region
    $region58: #{policy_forward.1} parent=1 // pred_check
      _
    $region59: #{policy_forward.1} parent=1 // pred_check_branch
      %224 = sbr.rel (0) target = $region61
    $region60: #{policy_forward.1} parent=1 // pred_region
      _
    $region61: #{policy_forward.1} parent=1 // pred_fallthru
      _
    %225 = vsyncpa [#allocation3], 1
    %226 = vsyncpa [#allocation5], 1
    %227 = vsyncpa [#allocation8], 1

</llo_original>
